<compile_context>
chip_gen: v6e
topology: v6e:2x2x1
jax: 0.10.0
libtpu: 0.0.40
codegen_flags: <defaults>
</compile_context>

<pallas_src>
import jax
import jax.numpy as jnp
from jax import lax
from jax.experimental import pallas as pl
from jax.experimental.pallas import tpu as pltpu

_LANE = 128
_SUBLANE = 8
_MAX_TILE_ROWS = 512      # 512 rows * 128 lanes * 4 B = 256 KiB per channel slab;
                          # double-buffered (3 in + 9 out ch) ~= 6 MiB total.
_SUB_ROWS = 32            # sub-slab height for the MAC loop (bounds live vregs)
_NEG_SLOPE = -0.55


def _round_up(a, b):
    return (a + b - 1) // b * b


def _convt1x1_leaky_kernel(w_ref, b_ref, x_ref, o_ref):
    # w_ref: SMEM f32[C_in*C_out] row-major (ci, co); b_ref: SMEM f32[C_out]
    # x_ref: VMEM f32[C_in, tr, 128]; o_ref: VMEM f32[C_out, tr, 128]
    c_in = x_ref.shape[0]
    c_out = o_ref.shape[0]
    tr = x_ref.shape[1]

    # Largest sub-slab height that divides tr.  tr is a multiple of 8 whenever
    # it exceeds 8; otherwise tr == rows < 8 and we take the whole block.
    sub = tr
    for cand in (_SUB_ROWS, 16, _SUBLANE):
        if tr % cand == 0:
            sub = cand
            break
    n_sub = tr // sub

    def body(s, carry):
        start = pl.multiple_of(s * sub, sub)
        sl = pl.ds(start, sub)
        # Load the C_in input slabs once per sub-slab; 3 * sub/8 + sub/8 live
        # vregs (~16 at sub=32) — no spill risk at large tiles.
        xs = [x_ref[ci, sl, :].astype(jnp.float32) for ci in range(c_in)]
        for co in range(c_out):                   # C_out * C_in = 27 VPU MACs
            acc = xs[0] * w_ref[co]
            for ci in range(1, c_in):
                acc = acc + xs[ci] * w_ref[ci * c_out + co]
            acc = acc + b_ref[co]
            # slope in (-1, 0)  =>  where(a > 0, a, a*s) == max(a, a*s)
            o_ref[co, sl, :] = jnp.maximum(acc, acc * _NEG_SLOPE).astype(o_ref.dtype)
        return carry

    lax.fori_loop(0, n_sub, body, 0, unroll=True)


def convt1x1_leaky(x_nchw, w_io, b):
    """Pointwise transposed conv (1x1, stride 1) + leaky gate (slope -0.55).

    x_nchw: (N, C_in, H, W); w_io: (C_in, C_out); b: (C_out,).
    """
    N, C_in, H, W = x_nchw.shape
    C_out = w_io.shape[1]
    M = N * H * W

    # (N, C_in, H, W) -> (C_in, M): one cheap N<->C transpose; M lives on the
    # fast (sublane, lane) axes.  Pad only to the next lane multiple (<= 127
    # elements, fused with the transpose copy) — no padding to a tile multiple.
    x_t = jnp.transpose(x_nchw, (1, 0, 2, 3)).reshape(C_in, M)
    M_pad = _round_up(M, _LANE)
    if M_pad != M:
        x_t = jnp.pad(x_t, ((0, 0), (0, M_pad - M)))
    rows = M_pad // _LANE
    x_3d = x_t.reshape(C_in, rows, _LANE)

    # Tile selection: as big as VMEM comfortably allows, but keep >= 2 grid
    # steps for larger inputs so v7x's second TensorCore is not idle.
    if rows <= _SUBLANE:
        tr = rows                                  # single full-extent block
    else:
        tr = min(_MAX_TILE_ROWS, _round_up(pl.cdiv(rows, 2), _SUBLANE))
    grid = pl.cdiv(rows, tr)                       # ragged last block is fine

    w_flat = w_io.reshape(C_in * C_out).astype(jnp.float32)
    b_flat = b.astype(jnp.float32)

    smem = pl.BlockSpec(memory_space=pltpu.MemorySpace.SMEM)
    out_3d = pl.pallas_call(
        _convt1x1_leaky_kernel,
        out_shape=jax.ShapeDtypeStruct((C_out, rows, _LANE), x_nchw.dtype),
        grid_spec=pltpu.PrefetchScalarGridSpec(
            num_scalar_prefetch=0,
            grid=(grid,),
            in_specs=[
                smem,                                            # 27 weight scalars
                smem,                                            # 9 bias scalars
                pl.BlockSpec((C_in, tr, _LANE), lambda i: (0, i, 0)),
            ],
            out_specs=pl.BlockSpec((C_out, tr, _LANE), lambda i: (0, i, 0)),
        ),
        compiler_params=pltpu.CompilerParams(
            dimension_semantics=("parallel",),     # M-tiles are independent
        ),
    )(w_flat, b_flat, x_3d)

    # (C_out, rows, 128) -> (C_out, M) -> NCHW; padded tail rows are discarded.
    out_t = out_3d.reshape(C_out, M_pad)[:, :M]
    return jnp.transpose(out_t.reshape(C_out, N, H, W), (1, 0, 2, 3))


if __name__ == "__main__":
    key = jax.random.PRNGKey(0)
    kx, kw, kb = jax.random.split(key, 3)

    N, C_in, H, W = 15, 3, 4, 3
    C_out = 9

    x4 = jax.random.normal(kx, (N, C_in, H, W), dtype=jnp.float32)
    # ConvTranspose2d weight has shape (C_in, C_out, 1, 1); squeeze to (C_in, C_out).
    w = jax.random.normal(kw, (C_in, C_out), dtype=jnp.float32) * 0.1
    b = jax.random.normal(kb, (C_out,), dtype=jnp.float32) * 0.1

    out = convt1x1_leaky(x4, w, b)
    out = jax.block_until_ready(out)

    # Pure-JAX reference for correctness.
    ref = jnp.einsum("nchw,co->nohw", x4, w) + b[None, :, None, None]
    ref = jnp.where(ref > 0, ref, ref * -0.55)

    assert out.shape == (N, C_out, H, W), out.shape
    assert jnp.allclose(out, ref, atol=1e-5, rtol=1e-5), float(
        jnp.max(jnp.abs(out - ref))
    )
    print("KERNEL_OK")
</pallas_src>

<mosaic_0001>
module attributes {stable_mosaic.version = 11 : i64} {
  func.func @_convt1x1_leaky_kernel(%arg0: i32, %arg1: memref<27xf32, #tpu.memory_space<smem>>, %arg2: memref<9xf32, #tpu.memory_space<smem>>, %arg3: memref<3x2x128xf32, #tpu.memory_space<vmem>>, %arg4: memref<9x2x128xf32, #tpu.memory_space<vmem>>) attributes {dimension_semantics = [#tpu.dimension_semantics<parallel>], iteration_bounds = array<i64: 1>, scalar_prefetch = 0 : i64, scratch_operands = 0 : i64, tpu.core_type = #tpu.core_type<tc>, window_params = [{transform_indices = @transform_0, window_bounds = array<i64: 27>}, {transform_indices = @transform_1, window_bounds = array<i64: 9>}, {transform_indices = @transform_2, window_bounds = array<i64: 3, 2, 128>}, {transform_indices = @transform_3, window_bounds = array<i64: 9, 2, 128>}]} {
    %c0_i32 = arith.constant 0 : i32
    %c2_i32 = arith.constant 2 : i32
    %0 = arith.muli %c0_i32, %c2_i32 : i32
    %1 = tpu.assume_multiple %0, 2 : i32
    %c0 = arith.constant 0 : index
    %2 = arith.index_cast %1 : i32 to index
    %c0_0 = arith.constant 0 : index
    %3 = vector.load %arg3[%c0, %2, %c0_0] : memref<3x2x128xf32, #tpu.memory_space<vmem>>, vector<1x2x128xf32>
    %4 = vector.shape_cast %3 : vector<1x2x128xf32> to vector<2x128xf32>
    %c1 = arith.constant 1 : index
    %5 = arith.index_cast %1 : i32 to index
    %c0_1 = arith.constant 0 : index
    %6 = vector.load %arg3[%c1, %5, %c0_1] : memref<3x2x128xf32, #tpu.memory_space<vmem>>, vector<1x2x128xf32>
    %7 = vector.shape_cast %6 : vector<1x2x128xf32> to vector<2x128xf32>
    %c2 = arith.constant 2 : index
    %8 = arith.index_cast %1 : i32 to index
    %c0_2 = arith.constant 0 : index
    %9 = vector.load %arg3[%c2, %8, %c0_2] : memref<3x2x128xf32, #tpu.memory_space<vmem>>, vector<1x2x128xf32>
    %10 = vector.shape_cast %9 : vector<1x2x128xf32> to vector<2x128xf32>
    %c0_3 = arith.constant 0 : index
    %11 = memref.load %arg1[%c0_3] : memref<27xf32, #tpu.memory_space<smem>>
    %12 = vector.broadcast %11 : f32 to vector<2x128xf32>
    %13 = arith.mulf %4, %12 : vector<2x128xf32>
    %c9 = arith.constant 9 : index
    %14 = memref.load %arg1[%c9] : memref<27xf32, #tpu.memory_space<smem>>
    %15 = vector.broadcast %14 : f32 to vector<2x128xf32>
    %16 = arith.mulf %7, %15 : vector<2x128xf32>
    %17 = arith.addf %13, %16 : vector<2x128xf32>
    %c18 = arith.constant 18 : index
    %18 = memref.load %arg1[%c18] : memref<27xf32, #tpu.memory_space<smem>>
    %19 = vector.broadcast %18 : f32 to vector<2x128xf32>
    %20 = arith.mulf %10, %19 : vector<2x128xf32>
    %21 = arith.addf %17, %20 : vector<2x128xf32>
    %c0_4 = arith.constant 0 : index
    %22 = memref.load %arg2[%c0_4] : memref<9xf32, #tpu.memory_space<smem>>
    %23 = vector.broadcast %22 : f32 to vector<2x128xf32>
    %24 = arith.addf %21, %23 : vector<2x128xf32>
    %cst = arith.constant -5.500000e-01 : f32
    %25 = vector.broadcast %cst : f32 to vector<2x128xf32>
    %26 = arith.mulf %24, %25 : vector<2x128xf32>
    %27 = arith.maximumf %24, %26 : vector<2x128xf32>
    %c0_5 = arith.constant 0 : index
    %28 = arith.index_cast %1 : i32 to index
    %c0_6 = arith.constant 0 : index
    %29 = vector.load %arg4[%c0_5, %28, %c0_6] : memref<9x2x128xf32, #tpu.memory_space<vmem>>, vector<1x2x128xf32>
    %30 = vector.shape_cast %29 : vector<1x2x128xf32> to vector<2x128xf32>
    %31 = vector.shape_cast %27 : vector<2x128xf32> to vector<1x2x128xf32>
    tpu.vector_store %arg4[%c0_5, %28, %c0_6], %31 {strides = array<i32>} : memref<9x2x128xf32, #tpu.memory_space<vmem>>, vector<1x2x128xf32>,
    %c1_7 = arith.constant 1 : index
    %32 = memref.load %arg1[%c1_7] : memref<27xf32, #tpu.memory_space<smem>>
    %33 = vector.broadcast %32 : f32 to vector<2x128xf32>
    %34 = arith.mulf %4, %33 : vector<2x128xf32>
    %c10 = arith.constant 10 : index
    %35 = memref.load %arg1[%c10] : memref<27xf32, #tpu.memory_space<smem>>
    %36 = vector.broadcast %35 : f32 to vector<2x128xf32>
    %37 = arith.mulf %7, %36 : vector<2x128xf32>
    %38 = arith.addf %34, %37 : vector<2x128xf32>
    %c19 = arith.constant 19 : index
    %39 = memref.load %arg1[%c19] : memref<27xf32, #tpu.memory_space<smem>>
    %40 = vector.broadcast %39 : f32 to vector<2x128xf32>
    %41 = arith.mulf %10, %40 : vector<2x128xf32>
    %42 = arith.addf %38, %41 : vector<2x128xf32>
    %c1_8 = arith.constant 1 : index
    %43 = memref.load %arg2[%c1_8] : memref<9xf32, #tpu.memory_space<smem>>
    %44 = vector.broadcast %43 : f32 to vector<2x128xf32>
    %45 = arith.addf %42, %44 : vector<2x128xf32>
    %cst_9 = arith.constant -5.500000e-01 : f32
    %46 = vector.broadcast %cst_9 : f32 to vector<2x128xf32>
    %47 = arith.mulf %45, %46 : vector<2x128xf32>
    %48 = arith.maximumf %45, %47 : vector<2x128xf32>
    %c1_10 = arith.constant 1 : index
    %49 = arith.index_cast %1 : i32 to index
    %c0_11 = arith.constant 0 : index
    %50 = vector.load %arg4[%c1_10, %49, %c0_11] : memref<9x2x128xf32, #tpu.memory_space<vmem>>, vector<1x2x128xf32>
    %51 = vector.shape_cast %50 : vector<1x2x128xf32> to vector<2x128xf32>
    %52 = vector.shape_cast %48 : vector<2x128xf32> to vector<1x2x128xf32>
    tpu.vector_store %arg4[%c1_10, %49, %c0_11], %52 {strides = array<i32>} : memref<9x2x128xf32, #tpu.memory_space<vmem>>, vector<1x2x128xf32>,
    %c2_12 = arith.constant 2 : index
    %53 = memref.load %arg1[%c2_12] : memref<27xf32, #tpu.memory_space<smem>>
    %54 = vector.broadcast %53 : f32 to vector<2x128xf32>
    %55 = arith.mulf %4, %54 : vector<2x128xf32>
    %c11 = arith.constant 11 : index
    %56 = memref.load %arg1[%c11] : memref<27xf32, #tpu.memory_space<smem>>
    %57 = vector.broadcast %56 : f32 to vector<2x128xf32>
    %58 = arith.mulf %7, %57 : vector<2x128xf32>
    %59 = arith.addf %55, %58 : vector<2x128xf32>
    %c20 = arith.constant 20 : index
    %60 = memref.load %arg1[%c20] : memref<27xf32, #tpu.memory_space<smem>>
    %61 = vector.broadcast %60 : f32 to vector<2x128xf32>
    %62 = arith.mulf %10, %61 : vector<2x128xf32>
    %63 = arith.addf %59, %62 : vector<2x128xf32>
    %c2_13 = arith.constant 2 : index
    %64 = memref.load %arg2[%c2_13] : memref<9xf32, #tpu.memory_space<smem>>
    %65 = vector.broadcast %64 : f32 to vector<2x128xf32>
    %66 = arith.addf %63, %65 : vector<2x128xf32>
    %cst_14 = arith.constant -5.500000e-01 : f32
    %67 = vector.broadcast %cst_14 : f32 to vector<2x128xf32>
    %68 = arith.mulf %66, %67 : vector<2x128xf32>
    %69 = arith.maximumf %66, %68 : vector<2x128xf32>
    %c2_15 = arith.constant 2 : index
    %70 = arith.index_cast %1 : i32 to index
    %c0_16 = arith.constant 0 : index
    %71 = vector.load %arg4[%c2_15, %70, %c0_16] : memref<9x2x128xf32, #tpu.memory_space<vmem>>, vector<1x2x128xf32>
    %72 = vector.shape_cast %71 : vector<1x2x128xf32> to vector<2x128xf32>
    %73 = vector.shape_cast %69 : vector<2x128xf32> to vector<1x2x128xf32>
    tpu.vector_store %arg4[%c2_15, %70, %c0_16], %73 {strides = array<i32>} : memref<9x2x128xf32, #tpu.memory_space<vmem>>, vector<1x2x128xf32>,
    %c3 = arith.constant 3 : index
    %74 = memref.load %arg1[%c3] : memref<27xf32, #tpu.memory_space<smem>>
    %75 = vector.broadcast %74 : f32 to vector<2x128xf32>
    %76 = arith.mulf %4, %75 : vector<2x128xf32>
    %c12 = arith.constant 12 : index
    %77 = memref.load %arg1[%c12] : memref<27xf32, #tpu.memory_space<smem>>
    %78 = vector.broadcast %77 : f32 to vector<2x128xf32>
    %79 = arith.mulf %7, %78 : vector<2x128xf32>
    %80 = arith.addf %76, %79 : vector<2x128xf32>
    %c21 = arith.constant 21 : index
    %81 = memref.load %arg1[%c21] : memref<27xf32, #tpu.memory_space<smem>>
    %82 = vector.broadcast %81 : f32 to vector<2x128xf32>
    %83 = arith.mulf %10, %82 : vector<2x128xf32>
    %84 = arith.addf %80, %83 : vector<2x128xf32>
    %c3_17 = arith.constant 3 : index
    %85 = memref.load %arg2[%c3_17] : memref<9xf32, #tpu.memory_space<smem>>
    %86 = vector.broadcast %85 : f32 to vector<2x128xf32>
    %87 = arith.addf %84, %86 : vector<2x128xf32>
    %cst_18 = arith.constant -5.500000e-01 : f32
    %88 = vector.broadcast %cst_18 : f32 to vector<2x128xf32>
    %89 = arith.mulf %87, %88 : vector<2x128xf32>
    %90 = arith.maximumf %87, %89 : vector<2x128xf32>
    %c3_19 = arith.constant 3 : index
    %91 = arith.index_cast %1 : i32 to index
    %c0_20 = arith.constant 0 : index
    %92 = vector.load %arg4[%c3_19, %91, %c0_20] : memref<9x2x128xf32, #tpu.memory_space<vmem>>, vector<1x2x128xf32>
    %93 = vector.shape_cast %92 : vector<1x2x128xf32> to vector<2x128xf32>
    %94 = vector.shape_cast %90 : vector<2x128xf32> to vector<1x2x128xf32>
    tpu.vector_store %arg4[%c3_19, %91, %c0_20], %94 {strides = array<i32>} : memref<9x2x128xf32, #tpu.memory_space<vmem>>, vector<1x2x128xf32>,
    %c4 = arith.constant 4 : index
    %95 = memref.load %arg1[%c4] : memref<27xf32, #tpu.memory_space<smem>>
    %96 = vector.broadcast %95 : f32 to vector<2x128xf32>
    %97 = arith.mulf %4, %96 : vector<2x128xf32>
    %c13 = arith.constant 13 : index
    %98 = memref.load %arg1[%c13] : memref<27xf32, #tpu.memory_space<smem>>
    %99 = vector.broadcast %98 : f32 to vector<2x128xf32>
    %100 = arith.mulf %7, %99 : vector<2x128xf32>
    %101 = arith.addf %97, %100 : vector<2x128xf32>
    %c22 = arith.constant 22 : index
    %102 = memref.load %arg1[%c22] : memref<27xf32, #tpu.memory_space<smem>>
    %103 = vector.broadcast %102 : f32 to vector<2x128xf32>
    %104 = arith.mulf %10, %103 : vector<2x128xf32>
    %105 = arith.addf %101, %104 : vector<2x128xf32>
    %c4_21 = arith.constant 4 : index
    %106 = memref.load %arg2[%c4_21] : memref<9xf32, #tpu.memory_space<smem>>
    %107 = vector.broadcast %106 : f32 to vector<2x128xf32>
    %108 = arith.addf %105, %107 : vector<2x128xf32>
    %cst_22 = arith.constant -5.500000e-01 : f32
    %109 = vector.broadcast %cst_22 : f32 to vector<2x128xf32>
    %110 = arith.mulf %108, %109 : vector<2x128xf32>
    %111 = arith.maximumf %108, %110 : vector<2x128xf32>
    %c4_23 = arith.constant 4 : index
    %112 = arith.index_cast %1 : i32 to index
    %c0_24 = arith.constant 0 : index
    %113 = vector.load %arg4[%c4_23, %112, %c0_24] : memref<9x2x128xf32, #tpu.memory_space<vmem>>, vector<1x2x128xf32>
    %114 = vector.shape_cast %113 : vector<1x2x128xf32> to vector<2x128xf32>
    %115 = vector.shape_cast %111 : vector<2x128xf32> to vector<1x2x128xf32>
    tpu.vector_store %arg4[%c4_23, %112, %c0_24], %115 {strides = array<i32>} : memref<9x2x128xf32, #tpu.memory_space<vmem>>, vector<1x2x128xf32>,
    %c5 = arith.constant 5 : index
    %116 = memref.load %arg1[%c5] : memref<27xf32, #tpu.memory_space<smem>>
    %117 = vector.broadcast %116 : f32 to vector<2x128xf32>
    %118 = arith.mulf %4, %117 : vector<2x128xf32>
    %c14 = arith.constant 14 : index
    %119 = memref.load %arg1[%c14] : memref<27xf32, #tpu.memory_space<smem>>
    %120 = vector.broadcast %119 : f32 to vector<2x128xf32>
    %121 = arith.mulf %7, %120 : vector<2x128xf32>
    %122 = arith.addf %118, %121 : vector<2x128xf32>
    %c23 = arith.constant 23 : index
    %123 = memref.load %arg1[%c23] : memref<27xf32, #tpu.memory_space<smem>>
    %124 = vector.broadcast %123 : f32 to vector<2x128xf32>
    %125 = arith.mulf %10, %124 : vector<2x128xf32>
    %126 = arith.addf %122, %125 : vector<2x128xf32>
    %c5_25 = arith.constant 5 : index
    %127 = memref.load %arg2[%c5_25] : memref<9xf32, #tpu.memory_space<smem>>
    %128 = vector.broadcast %127 : f32 to vector<2x128xf32>
    %129 = arith.addf %126, %128 : vector<2x128xf32>
    %cst_26 = arith.constant -5.500000e-01 : f32
    %130 = vector.broadcast %cst_26 : f32 to vector<2x128xf32>
    %131 = arith.mulf %129, %130 : vector<2x128xf32>
    %132 = arith.maximumf %129, %131 : vector<2x128xf32>
    %c5_27 = arith.constant 5 : index
    %133 = arith.index_cast %1 : i32 to index
    %c0_28 = arith.constant 0 : index
    %134 = vector.load %arg4[%c5_27, %133, %c0_28] : memref<9x2x128xf32, #tpu.memory_space<vmem>>, vector<1x2x128xf32>
    %135 = vector.shape_cast %134 : vector<1x2x128xf32> to vector<2x128xf32>
    %136 = vector.shape_cast %132 : vector<2x128xf32> to vector<1x2x128xf32>
    tpu.vector_store %arg4[%c5_27, %133, %c0_28], %136 {strides = array<i32>} : memref<9x2x128xf32, #tpu.memory_space<vmem>>, vector<1x2x128xf32>,
    %c6 = arith.constant 6 : index
    %137 = memref.load %arg1[%c6] : memref<27xf32, #tpu.memory_space<smem>>
    %138 = vector.broadcast %137 : f32 to vector<2x128xf32>
    %139 = arith.mulf %4, %138 : vector<2x128xf32>
    %c15 = arith.constant 15 : index
    %140 = memref.load %arg1[%c15] : memref<27xf32, #tpu.memory_space<smem>>
    %141 = vector.broadcast %140 : f32 to vector<2x128xf32>
    %142 = arith.mulf %7, %141 : vector<2x128xf32>
    %143 = arith.addf %139, %142 : vector<2x128xf32>
    %c24 = arith.constant 24 : index
    %144 = memref.load %arg1[%c24] : memref<27xf32, #tpu.memory_space<smem>>
    %145 = vector.broadcast %144 : f32 to vector<2x128xf32>
    %146 = arith.mulf %10, %145 : vector<2x128xf32>
    %147 = arith.addf %143, %146 : vector<2x128xf32>
    %c6_29 = arith.constant 6 : index
    %148 = memref.load %arg2[%c6_29] : memref<9xf32, #tpu.memory_space<smem>>
    %149 = vector.broadcast %148 : f32 to vector<2x128xf32>
    %150 = arith.addf %147, %149 : vector<2x128xf32>
    %cst_30 = arith.constant -5.500000e-01 : f32
    %151 = vector.broadcast %cst_30 : f32 to vector<2x128xf32>
    %152 = arith.mulf %150, %151 : vector<2x128xf32>
    %153 = arith.maximumf %150, %152 : vector<2x128xf32>
    %c6_31 = arith.constant 6 : index
    %154 = arith.index_cast %1 : i32 to index
    %c0_32 = arith.constant 0 : index
    %155 = vector.load %arg4[%c6_31, %154, %c0_32] : memref<9x2x128xf32, #tpu.memory_space<vmem>>, vector<1x2x128xf32>
    %156 = vector.shape_cast %155 : vector<1x2x128xf32> to vector<2x128xf32>
    %157 = vector.shape_cast %153 : vector<2x128xf32> to vector<1x2x128xf32>
    tpu.vector_store %arg4[%c6_31, %154, %c0_32], %157 {strides = array<i32>} : memref<9x2x128xf32, #tpu.memory_space<vmem>>, vector<1x2x128xf32>,
    %c7 = arith.constant 7 : index
    %158 = memref.load %arg1[%c7] : memref<27xf32, #tpu.memory_space<smem>>
    %159 = vector.broadcast %158 : f32 to vector<2x128xf32>
    %160 = arith.mulf %4, %159 : vector<2x128xf32>
    %c16 = arith.constant 16 : index
    %161 = memref.load %arg1[%c16] : memref<27xf32, #tpu.memory_space<smem>>
    %162 = vector.broadcast %161 : f32 to vector<2x128xf32>
    %163 = arith.mulf %7, %162 : vector<2x128xf32>
    %164 = arith.addf %160, %163 : vector<2x128xf32>
    %c25 = arith.constant 25 : index
    %165 = memref.load %arg1[%c25] : memref<27xf32, #tpu.memory_space<smem>>
    %166 = vector.broadcast %165 : f32 to vector<2x128xf32>
    %167 = arith.mulf %10, %166 : vector<2x128xf32>
    %168 = arith.addf %164, %167 : vector<2x128xf32>
    %c7_33 = arith.constant 7 : index
    %169 = memref.load %arg2[%c7_33] : memref<9xf32, #tpu.memory_space<smem>>
    %170 = vector.broadcast %169 : f32 to vector<2x128xf32>
    %171 = arith.addf %168, %170 : vector<2x128xf32>
    %cst_34 = arith.constant -5.500000e-01 : f32
    %172 = vector.broadcast %cst_34 : f32 to vector<2x128xf32>
    %173 = arith.mulf %171, %172 : vector<2x128xf32>
    %174 = arith.maximumf %171, %173 : vector<2x128xf32>
    %c7_35 = arith.constant 7 : index
    %175 = arith.index_cast %1 : i32 to index
    %c0_36 = arith.constant 0 : index
    %176 = vector.load %arg4[%c7_35, %175, %c0_36] : memref<9x2x128xf32, #tpu.memory_space<vmem>>, vector<1x2x128xf32>
    %177 = vector.shape_cast %176 : vector<1x2x128xf32> to vector<2x128xf32>
    %178 = vector.shape_cast %174 : vector<2x128xf32> to vector<1x2x128xf32>
    tpu.vector_store %arg4[%c7_35, %175, %c0_36], %178 {strides = array<i32>} : memref<9x2x128xf32, #tpu.memory_space<vmem>>, vector<1x2x128xf32>,
    %c8 = arith.constant 8 : index
    %179 = memref.load %arg1[%c8] : memref<27xf32, #tpu.memory_space<smem>>
    %180 = vector.broadcast %179 : f32 to vector<2x128xf32>
    %181 = arith.mulf %4, %180 : vector<2x128xf32>
    %c17 = arith.constant 17 : index
    %182 = memref.load %arg1[%c17] : memref<27xf32, #tpu.memory_space<smem>>
    %183 = vector.broadcast %182 : f32 to vector<2x128xf32>
    %184 = arith.mulf %7, %183 : vector<2x128xf32>
    %185 = arith.addf %181, %184 : vector<2x128xf32>
    %c26 = arith.constant 26 : index
    %186 = memref.load %arg1[%c26] : memref<27xf32, #tpu.memory_space<smem>>
    %187 = vector.broadcast %186 : f32 to vector<2x128xf32>
    %188 = arith.mulf %10, %187 : vector<2x128xf32>
    %189 = arith.addf %185, %188 : vector<2x128xf32>
    %c8_37 = arith.constant 8 : index
    %190 = memref.load %arg2[%c8_37] : memref<9xf32, #tpu.memory_space<smem>>
    %191 = vector.broadcast %190 : f32 to vector<2x128xf32>
    %192 = arith.addf %189, %191 : vector<2x128xf32>
    %cst_38 = arith.constant -5.500000e-01 : f32
    %193 = vector.broadcast %cst_38 : f32 to vector<2x128xf32>
    %194 = arith.mulf %192, %193 : vector<2x128xf32>
    %195 = arith.maximumf %192, %194 : vector<2x128xf32>
    %c8_39 = arith.constant 8 : index
    %196 = arith.index_cast %1 : i32 to index
    %c0_40 = arith.constant 0 : index
    %197 = vector.load %arg4[%c8_39, %196, %c0_40] : memref<9x2x128xf32, #tpu.memory_space<vmem>>, vector<1x2x128xf32>
    %198 = vector.shape_cast %197 : vector<1x2x128xf32> to vector<2x128xf32>
    %199 = vector.shape_cast %195 : vector<2x128xf32> to vector<1x2x128xf32>
    tpu.vector_store %arg4[%c8_39, %196, %c0_40], %199 {strides = array<i32>} : memref<9x2x128xf32, #tpu.memory_space<vmem>>, vector<1x2x128xf32>,
    %c1_i32 = arith.constant 1 : i32
    return
  }
  func.func @transform_0(%arg0: i32) -> i32 {
    %c0_i32 = arith.constant 0 : i32
    %c0_i32_0 = arith.constant 0 : i32
    return %c0_i32 : i32
  }
  func.func @transform_1(%arg0: i32) -> i32 {
    %c0_i32 = arith.constant 0 : i32
    %c0_i32_0 = arith.constant 0 : i32
    return %c0_i32 : i32
  }
  func.func @transform_2(%arg0: i32) -> (i32, i32, i32) {
    %c0_i32 = arith.constant 0 : i32
    %c0_i32_0 = arith.constant 0 : i32
    %c0_i32_1 = arith.constant 0 : i32
    return %c0_i32, %arg0, %c0_i32_0 : i32, i32, i32
  }
  func.func @transform_3(%arg0: i32) -> (i32, i32, i32) {
    %c0_i32 = arith.constant 0 : i32
    %c0_i32_0 = arith.constant 0 : i32
    %c0_i32_1 = arith.constant 0 : i32
    return %c0_i32, %arg0, %c0_i32_0 : i32, i32, i32
  }
}

</mosaic_0001>

<llo_original>
// kernel: tpu_custom_call.1
$region0: #{tpu_custom_call.1}
  #allocation0 [shape = 'u32[]', space=smem, size = 0x4, offset = 0x4, fixed_abs, tag = 'smem constant byte address 0x4 - core index']
  #allocation1 [shape = 'u32[144,128]{1,0:T(1,128)}', space=vmem, size = 0x12000, scoped, tag = 'internal scratch']
  %s0 = inlined_call_operand.hbm [shape: f32[27], index: 0, kind: input, shape index: {}]
  %s1 = inlined_call_operand.vmem [shape: f32[9], index: 1, kind: input, shape index: {}]
  %s2 = inlined_call_operand.hbm [shape: f32[3,2,128], index: 2, kind: input, shape index: {}]
  %s3 = inlined_call_operand.hbm [shape: f32[9,2,128], index: 3, kind: output, shape index: {}]
  %s4 = sld [smem:[#allocation0]]
  $region34: #{tpu_custom_call.1} parent=0
    _
  %s6 = ssub.s32 1, %s4
  %s7 = scalar_select 0, %s6, %s4
  $region1: #{tpu_custom_call.1} parent=0
    #allocation2 [shape = 'u8[512]{0}', space=smem, size = 0x200, scoped, tag = 'input window, operand 0, single buffered']
    #allocation3 [shape = 's32[1]{0}', space=sflag, size = 0x4, scoped, tag = 'scoped memory for tpu_custom_call.1']
    #allocation4 [shape = 's32[1]{0}', space=sflag, size = 0x4, scoped, tag = 'scoped memory for tpu_custom_call.1']
    #allocation5 [shape = 's32[1]{0}', space=sflag, size = 0x4, scoped, tag = 'scoped memory for tpu_custom_call.1']
    #allocation6 [shape = 's32[1]{0}', space=sflag, size = 0x4, scoped, tag = 'scoped memory for tpu_custom_call.1']
    #allocation7 [shape = 'u8[512]{0}', space=smem, size = 0x200, scoped, tag = 'input window, operand 1, single buffered']
    #allocation8 [shape = 'u8[3072]{0}', space=vmem, size = 0xc00, scoped, tag = 'input window, operand 2, single buffered']
    #allocation9 [shape = 'u8[9216]{0}', space=vmem, size = 0x2400, scoped, tag = 'output window, operand 0, single buffered']
    %8 = vsyncpa [#allocation5], 0
    %9 = vsyncpa [#allocation6], 0
    %10 = vsyncpa [#allocation3], 0
    %11 = vsyncpa [#allocation4], 0
    // Predicated region
    $region2: #{tpu_custom_call.1} parent=1 // pred_check
      _
    $region3: #{tpu_custom_call.1} parent=1 // pred_check_branch
      %13 = sbr.rel (0) target = $region5
    $region4: #{tpu_custom_call.1} parent=1 // pred_region
      %s15 = ssub.s32 16, 16
      %16 = vsyncadd [#allocation5], %s15
      %19 = dma.hbm_to_smem %s0, 16, [#allocation2], [#allocation5]
    $region5: #{tpu_custom_call.1} parent=1 // pred_fallthru
      _
    // Predicated region
    $region6: #{tpu_custom_call.1} parent=1 // pred_check
      _
    $region7: #{tpu_custom_call.1} parent=1 // pred_check_branch
      %21 = sbr.rel (0) target = $region9
    $region8: #{tpu_custom_call.1} parent=1 // pred_region
      %s23 = ssub.s32 16, 16
      %24 = vsyncadd [#allocation6], %s23
      %s26 = sshll.u32 %s1, 4
      %s27 = int_to_ptr.vmem [resolvable:$true] %s26
      %29 = dma.vmem_to_smem %s27, 16, [#allocation7], [#allocation6]
    $region9: #{tpu_custom_call.1} parent=1 // pred_fallthru
      _
    // Predicated region
    $region10: #{tpu_custom_call.1} parent=1 // pred_check
      _
    $region11: #{tpu_custom_call.1} parent=1 // pred_check_branch
      %31 = sbr.rel (0) target = $region13
    $region12: #{tpu_custom_call.1} parent=1 // pred_region
      %s33 = ssub.s32 96, 96
      %34 = vsyncadd [#allocation3], %s33
      %s35 = sshll.u32 [#allocation8], 4
      %s36 = int_to_ptr.vmem [resolvable:$true] %s35
      %41 = dma.hbm_to_vmem [thread:$0]  %s2, 96, %s36, [#allocation3], 32, 32, 2
    $region13: #{tpu_custom_call.1} parent=1 // pred_fallthru
      _
    // Predicated region
    $region14: #{tpu_custom_call.1} parent=1 // pred_check
      _
    $region15: #{tpu_custom_call.1} parent=1 // pred_check_branch
      %43 = sbr.rel (0) target = $region17
    $region16: #{tpu_custom_call.1} parent=1 // pred_region
      %44 = dma.done [#allocation5], 16
    $region17: #{tpu_custom_call.1} parent=1 // pred_fallthru
      _
    // Predicated region
    $region18: #{tpu_custom_call.1} parent=1 // pred_check
      _
    $region19: #{tpu_custom_call.1} parent=1 // pred_check_branch
      %46 = sbr.rel (0) target = $region21
    $region20: #{tpu_custom_call.1} parent=1 // pred_region
      %47 = dma.done [#allocation6], 16
    $region21: #{tpu_custom_call.1} parent=1 // pred_fallthru
      _
    // Predicated region
    $region22: #{tpu_custom_call.1} parent=1 // pred_check
      _
    $region23: #{tpu_custom_call.1} parent=1 // pred_check_branch
      %49 = sbr.rel (0) target = $region25
    $region24: #{tpu_custom_call.1} parent=1 // pred_region
      %50 = dma.done [#allocation3], 96
    $region25: #{tpu_custom_call.1} parent=1 // pred_fallthru
      _
    %51 = sfence
    %v52 = vld [vmem:[#allocation8] sm:$0x3]
    %s53 = sadd.s32 0, 2
    %s54 = scalar_lea.vmem [#allocation8], %s53
    %v55 = vld [vmem:[%s54] sm:$0x3]
    %s56 = sadd.s32 0, 4
    %s57 = scalar_lea.vmem [#allocation8], %s56
    %v58 = vld [vmem:[%s57] sm:$0x3]
    %s59 = sld [smem:[#allocation2]]
    %v60 = vstv %s59
    %v61 = vmul.f32 %v52, %v60
    %s62 = sld [smem:[#allocation2 + $0x9]]
    %v63 = vstv %s62
    %v64 = vmul.f32 %v55, %v63
    %v65 = vadd.f32 %v61, %v64
    %s66 = sld [smem:[#allocation2 + $0x12]]
    %v67 = vstv %s66
    %v68 = vmul.f32 %v58, %v67
    %v69 = vadd.f32 %v65, %v68
    %s70 = sld [smem:[#allocation7]]
    %v71 = vstv %s70
    %v72 = vadd.f32 %v69, %v71
    %v73 = vmul.f32 %v72, -0.55
    %v74 = vmax.f32 %v72, %v73
    %75 = vst [vmem:[#allocation9] sm:$0x3] %v74
    %s76 = sld [smem:[#allocation2 + $0x1]]
    %v77 = vstv %s76
    %v78 = vmul.f32 %v52, %v77
    %s79 = sld [smem:[#allocation2 + $0xa]]
    %v80 = vstv %s79
    %v81 = vmul.f32 %v55, %v80
    %v82 = vadd.f32 %v78, %v81
    %s83 = sld [smem:[#allocation2 + $0x13]]
    %v84 = vstv %s83
    %v85 = vmul.f32 %v58, %v84
    %v86 = vadd.f32 %v82, %v85
    %s87 = sld [smem:[#allocation7 + $0x1]]
    %v88 = vstv %s87
    %v89 = vadd.f32 %v86, %v88
    %v90 = vmul.f32 %v89, -0.55
    %v91 = vmax.f32 %v89, %v90
    %s92 = scalar_lea.vmem [#allocation9], %s53
    %93 = vst [vmem:[%s92] sm:$0x3] %v91
    %s94 = sld [smem:[#allocation2 + $0x2]]
    %v95 = vstv %s94
    %v96 = vmul.f32 %v52, %v95
    %s97 = sld [smem:[#allocation2 + $0xb]]
    %v98 = vstv %s97
    %v99 = vmul.f32 %v55, %v98
    %v100 = vadd.f32 %v96, %v99
    %s101 = sld [smem:[#allocation2 + $0x14]]
    %v102 = vstv %s101
    %v103 = vmul.f32 %v58, %v102
    %v104 = vadd.f32 %v100, %v103
    %s105 = sld [smem:[#allocation7 + $0x2]]
    %v106 = vstv %s105
    %v107 = vadd.f32 %v104, %v106
    %v108 = vmul.f32 %v107, -0.55
    %v109 = vmax.f32 %v107, %v108
    %s110 = scalar_lea.vmem [#allocation9], %s56
    %111 = vst [vmem:[%s110] sm:$0x3] %v109
    %s112 = sld [smem:[#allocation2 + $0x3]]
    %v113 = vstv %s112
    %v114 = vmul.f32 %v52, %v113
    %s115 = sld [smem:[#allocation2 + $0xc]]
    %v116 = vstv %s115
    %v117 = vmul.f32 %v55, %v116
    %v118 = vadd.f32 %v114, %v117
    %s119 = sld [smem:[#allocation2 + $0x15]]
    %v120 = vstv %s119
    %v121 = vmul.f32 %v58, %v120
    %v122 = vadd.f32 %v118, %v121
    %s123 = sld [smem:[#allocation7 + $0x3]]
    %v124 = vstv %s123
    %v125 = vadd.f32 %v122, %v124
    %v126 = vmul.f32 %v125, -0.55
    %v127 = vmax.f32 %v125, %v126
    %s128 = sadd.s32 0, 6
    %s129 = scalar_lea.vmem [#allocation9], %s128
    %130 = vst [vmem:[%s129] sm:$0x3] %v127
    %s131 = sld [smem:[#allocation2 + $0x4]]
    %v132 = vstv %s131
    %v133 = vmul.f32 %v52, %v132
    %s134 = sld [smem:[#allocation2 + $0xd]]
    %v135 = vstv %s134
    %v136 = vmul.f32 %v55, %v135
    %v137 = vadd.f32 %v133, %v136
    %s138 = sld [smem:[#allocation2 + $0x16]]
    %v139 = vstv %s138
    %v140 = vmul.f32 %v58, %v139
    %v141 = vadd.f32 %v137, %v140
    %s142 = sld [smem:[#allocation7 + $0x4]]
    %v143 = vstv %s142
    %v144 = vadd.f32 %v141, %v143
    %v145 = vmul.f32 %v144, -0.55
    %v146 = vmax.f32 %v144, %v145
    %s147 = sadd.s32 0, 8
    %s148 = scalar_lea.vmem [#allocation9], %s147
    %149 = vst [vmem:[%s148] sm:$0x3] %v146
    %s150 = sld [smem:[#allocation2 + $0x5]]
    %v151 = vstv %s150
    %v152 = vmul.f32 %v52, %v151
    %s153 = sld [smem:[#allocation2 + $0xe]]
    %v154 = vstv %s153
    %v155 = vmul.f32 %v55, %v154
    %v156 = vadd.f32 %v152, %v155
    %s157 = sld [smem:[#allocation2 + $0x17]]
    %v158 = vstv %s157
    %v159 = vmul.f32 %v58, %v158
    %v160 = vadd.f32 %v156, %v159
    %s161 = sld [smem:[#allocation7 + $0x5]]
    %v162 = vstv %s161
    %v163 = vadd.f32 %v160, %v162
    %v164 = vmul.f32 %v163, -0.55
    %v165 = vmax.f32 %v163, %v164
    %s166 = sadd.s32 0, 10
    %s167 = scalar_lea.vmem [#allocation9], %s166
    %168 = vst [vmem:[%s167] sm:$0x3] %v165
    %s169 = sld [smem:[#allocation2 + $0x6]]
    %v170 = vstv %s169
    %v171 = vmul.f32 %v52, %v170
    %s172 = sld [smem:[#allocation2 + $0xf]]
    %v173 = vstv %s172
    %v174 = vmul.f32 %v55, %v173
    %v175 = vadd.f32 %v171, %v174
    %s176 = sld [smem:[#allocation2 + $0x18]]
    %v177 = vstv %s176
    %v178 = vmul.f32 %v58, %v177
    %v179 = vadd.f32 %v175, %v178
    %s180 = sld [smem:[#allocation7 + $0x6]]
    %v181 = vstv %s180
    %v182 = vadd.f32 %v179, %v181
    %v183 = vmul.f32 %v182, -0.55
    %v184 = vmax.f32 %v182, %v183
    %s185 = sadd.s32 0, 12
    %s186 = scalar_lea.vmem [#allocation9], %s185
    %187 = vst [vmem:[%s186] sm:$0x3] %v184
    %s188 = sld [smem:[#allocation2 + $0x7]]
    %v189 = vstv %s188
    %v190 = vmul.f32 %v52, %v189
    %s191 = sld [smem:[#allocation2 + $0x10]]
    %v192 = vstv %s191
    %v193 = vmul.f32 %v55, %v192
    %v194 = vadd.f32 %v190, %v193
    %s195 = sld [smem:[#allocation2 + $0x19]]
    %v196 = vstv %s195
    %v197 = vmul.f32 %v58, %v196
    %v198 = vadd.f32 %v194, %v197
    %s199 = sld [smem:[#allocation7 + $0x7]]
    %v200 = vstv %s199
    %v201 = vadd.f32 %v198, %v200
    %v202 = vmul.f32 %v201, -0.55
    %v203 = vmax.f32 %v201, %v202
    %s204 = sadd.s32 0, 14
    %s205 = scalar_lea.vmem [#allocation9], %s204
    %206 = vst [vmem:[%s205] sm:$0x3] %v203
    %s207 = sld [smem:[#allocation2 + $0x8]]
    %v208 = vstv %s207
    %v209 = vmul.f32 %v52, %v208
    %s210 = sld [smem:[#allocation2 + $0x11]]
    %v211 = vstv %s210
    %v212 = vmul.f32 %v55, %v211
    %v213 = vadd.f32 %v209, %v212
    %s214 = sld [smem:[#allocation2 + $0x1a]]
    %v215 = vstv %s214
    %v216 = vmul.f32 %v58, %v215
    %v217 = vadd.f32 %v213, %v216
    %s218 = sld [smem:[#allocation7 + $0x8]]
    %v219 = vstv %s218
    %v220 = vadd.f32 %v217, %v219
    %v221 = vmul.f32 %v220, -0.55
    %v222 = vmax.f32 %v220, %v221
    %s223 = sadd.s32 0, 16
    %s224 = scalar_lea.vmem [#allocation9], %s223
    %225 = vst [vmem:[%s224] sm:$0x3] %v222
    // Predicated region
    $region26: #{tpu_custom_call.1} parent=1 // pred_check
      _
    $region27: #{tpu_custom_call.1} parent=1 // pred_check_branch
      %227 = sbr.rel (0) target = $region29
    $region28: #{tpu_custom_call.1} parent=1 // pred_region
      %s229 = ssub.s32 288, 288
      %230 = vsyncadd [#allocation4], %s229
      %s231 = sshll.u32 [#allocation9], 4
      %s232 = int_to_ptr.vmem [resolvable:$true] %s231
      %237 = dma.vmem_to_hbm [thread:$0]  %s232, 288, %s3, [#allocation4], 32, 32, 2
    $region29: #{tpu_custom_call.1} parent=1 // pred_fallthru
      _
    // Predicated region
    $region30: #{tpu_custom_call.1} parent=1 // pred_check
      _
    $region31: #{tpu_custom_call.1} parent=1 // pred_check_branch
      %239 = sbr.rel (0) target = $region33
    $region32: #{tpu_custom_call.1} parent=1 // pred_region
      %240 = dma.done [#allocation4], 288
    $region33: #{tpu_custom_call.1} parent=1 // pred_fallthru
      _
    %241 = vsyncpa [#allocation3], 1
    %242 = vsyncpa [#allocation4], 1
    %243 = vsyncpa [#allocation5], 1
    %244 = vsyncpa [#allocation6], 1

</llo_original>
